<compile_context>
chip_gen: v7x
topology: tpu7x:2x2x1
jax: 0.10.0
libtpu: 0.0.40
codegen_flags: <defaults>
</compile_context>

<pallas_src>
import functools

import jax
import jax.numpy as jnp
from jax.experimental import pallas as pl
from jax.experimental.pallas import tpu as pltpu

HIDDEN_PAD = 128   # hidden = 8 * size = 64 -> padded to full lane width
OUT_DIM = 7        # logical output dim
OUT_PAD = 8        # output padded only to the sublane-friendly 8 (not 128)


def mlp_kernel(x_ref, w1_ref, b1_ref, w2_ref, b2_ref, w3_ref, b3_ref, o_ref):
    # x arrives f32; cast to bf16 in-kernel (free VPU filler) for the MXU.
    xb = x_ref[...].astype(jnp.bfloat16)
    # fc1 -> tanh   (MXU in bf16, accumulate f32; bias/tanh in f32)
    h = jnp.tanh(
        jnp.dot(xb, w1_ref[...], preferred_element_type=jnp.float32)
        + b1_ref[...]
    )
    # fc2 -> tanh
    h = jnp.tanh(
        jnp.dot(h.astype(jnp.bfloat16), w2_ref[...],
                preferred_element_type=jnp.float32)
        + b2_ref[...]
    )
    # fc3 (no activation); narrow (TB, 8) f32 store
    o_ref[...] = (
        jnp.dot(h.astype(jnp.bfloat16), w3_ref[...],
                preferred_element_type=jnp.float32)
        + b3_ref[...]
    ).astype(o_ref.dtype)


def _round_up(x, m):
    return ((x + m - 1) // m) * m


@functools.partial(jax.jit, static_argnames=("tb",))
def nn_forward(x, params, *, tb=2048):
    """Pallas implementation of NN.forward. x: (B, size) f32. Returns (B, 7) f32."""
    w1, b1, w2, b2, w3, b3 = params  # padded; weights bf16, biases f32
    B, size = x.shape

    # Batch tile: big enough to amortize ~0.35 us/step, but capped at ceil(B/2)
    # (rounded to 16) so the grid keeps >=2 steps for v7x megacore sharding.
    TB = min(tb, _round_up(max(-(-B // 2), 1), 16))
    Bp = _round_up(B, TB)

    xk = x
    if Bp != B:
        # TODO(synk): for very large ragged B, handle the last tile with a
        # pl.when-guarded masked store instead of materializing a padded copy.
        xk = jnp.pad(xk, ((0, Bp - B), (0, 0)))

    grid = (Bp // TB,)

    full = lambda arr: pl.BlockSpec(arr.shape, lambda i: (0, 0))  # VMEM-resident

    out = pl.pallas_call(
        mlp_kernel,
        out_shape=jax.ShapeDtypeStruct((Bp, OUT_PAD), jnp.float32),
        grid=grid,
        in_specs=[
            pl.BlockSpec((TB, size), lambda i: (i, 0)),   # x: streamed f32 tiles
            full(w1), full(b1),
            full(w2), full(b2),
            full(w3), full(b3),
        ],
        out_specs=pl.BlockSpec((TB, OUT_PAD), lambda i: (i, 0)),
        compiler_params=pltpu.CompilerParams(
            dimension_semantics=("parallel",),
        ),
    )(xk, w1, b1, w2, b2, w3, b3)

    return out[:B, :OUT_DIM]


def init_params(key, n_panels):
    """Torch-default uniform init for the forward path, then pad + cast for TPU.

    PyTorch Linear(in, out) weight is (out, in); we store the transpose (in, out).
    Hidden is zero-padded 64->128 and the output 7->8; the zero padding is
    mathematically inert (tanh(0)=0, zero rows/cols contribute nothing) and the
    extra output column is sliced off outside the kernel.
    """
    size = n_panels + 1
    hidden = 8 * size
    dims = [(size, hidden), (hidden, hidden), (hidden, OUT_DIM)]
    raw = []
    for (fan_in, fan_out) in dims:
        key, kw, kb = jax.random.split(key, 3)
        bound = 1.0 / jnp.sqrt(fan_in)
        w = jax.random.uniform(kw, (fan_in, fan_out), jnp.float32, -bound, bound)
        b = jax.random.uniform(kb, (1, fan_out), jnp.float32, -bound, bound)
        raw += [w, b]
    w1, b1, w2, b2, w3, b3 = raw

    # Pad to TPU-friendly shapes (hidden -> 128 lanes, output -> 8 lanes).
    w1p = jnp.pad(w1, ((0, 0), (0, HIDDEN_PAD - hidden)))
    b1p = jnp.pad(b1, ((0, 0), (0, HIDDEN_PAD - hidden)))
    w2p = jnp.pad(w2, ((0, HIDDEN_PAD - hidden), (0, HIDDEN_PAD - hidden)))
    b2p = jnp.pad(b2, ((0, 0), (0, HIDDEN_PAD - hidden)))
    w3p = jnp.pad(w3, ((0, HIDDEN_PAD - hidden), (0, OUT_PAD - OUT_DIM)))
    b3p = jnp.pad(b3, ((0, 0), (0, OUT_PAD - OUT_DIM)))

    padded = [w1p.astype(jnp.bfloat16), b1p,
              w2p.astype(jnp.bfloat16), b2p,
              w3p.astype(jnp.bfloat16), b3p]
    return padded, raw


def reference_forward_bf16(x, padded_params):
    """Mirrors the kernel's bf16-MXU / f32-elementwise arithmetic."""
    w1, b1, w2, b2, w3, b3 = padded_params
    h = jnp.tanh(jnp.dot(x.astype(jnp.bfloat16), w1,
                         preferred_element_type=jnp.float32) + b1)
    h = jnp.tanh(jnp.dot(h.astype(jnp.bfloat16), w2,
                         preferred_element_type=jnp.float32) + b2)
    out = jnp.dot(h.astype(jnp.bfloat16), w3,
                  preferred_element_type=jnp.float32) + b3
    return out[:, :OUT_DIM]


def reference_forward_f32(x, raw_params):
    """Pure-f32 reference on the unpadded weights (original module semantics)."""
    w1, b1, w2, b2, w3, b3 = raw_params
    h = jnp.tanh(x @ w1 + b1)
    h = jnp.tanh(h @ w2 + b2)
    return h @ w3 + b3


if __name__ == "__main__":
    n_panels = 7            # size = 8, hidden = 64 (padded 128), out = 7 (padded 8)
    batch = 64              # small test batch; real workloads stream TB=2048 tiles
    size = n_panels + 1

    key = jax.random.PRNGKey(0)
    key, kx = jax.random.split(key)
    x = jax.random.normal(kx, (batch, size), jnp.float32)
    padded_params, raw_params = init_params(key, n_panels)

    out = nn_forward(x, padded_params)
    out = jax.block_until_ready(out)

    assert out.shape == (batch, OUT_DIM)

    # Tight check against a reference using the same bf16 MXU arithmetic.
    ref_bf16 = reference_forward_bf16(x, padded_params)
    assert jnp.allclose(out, ref_bf16, atol=1e-3, rtol=1e-3)

    # Loose sanity check against the original full-f32 module math.
    ref_f32 = reference_forward_f32(x, raw_params)
    assert jnp.allclose(out, ref_f32, atol=5e-2, rtol=5e-2)

    print("KERNEL_OK")
</pallas_src>

<mosaic_0001>
module attributes {stable_mosaic.version = 11 : i64} {
  func.func @mlp_kernel(%arg0: i32, %arg1: memref<32x8xf32, #tpu.memory_space<vmem>>, %arg2: memref<8x128xbf16, #tpu.memory_space<vmem>>, %arg3: memref<1x128xf32, #tpu.memory_space<vmem>>, %arg4: memref<128x128xbf16, #tpu.memory_space<vmem>>, %arg5: memref<1x128xf32, #tpu.memory_space<vmem>>, %arg6: memref<128x8xbf16, #tpu.memory_space<vmem>>, %arg7: memref<1x8xf32, #tpu.memory_space<vmem>>, %arg8: memref<32x8xf32, #tpu.memory_space<vmem>>) attributes {dimension_semantics = [#tpu.dimension_semantics<parallel>], iteration_bounds = array<i64: 2>, scalar_prefetch = 0 : i64, scratch_operands = 0 : i64, tpu.core_type = #tpu.core_type<tc>, window_params = [{transform_indices = @transform_0, window_bounds = array<i64: 32, 8>}, {pipeline_mode = #tpu.pipeline_mode<synchronous>, transform_indices = @transform_1, window_bounds = array<i64: 8, 128>}, {pipeline_mode = #tpu.pipeline_mode<synchronous>, transform_indices = @transform_2, window_bounds = array<i64: 1, 128>}, {pipeline_mode = #tpu.pipeline_mode<synchronous>, transform_indices = @transform_3, window_bounds = array<i64: 128, 128>}, {pipeline_mode = #tpu.pipeline_mode<synchronous>, transform_indices = @transform_4, window_bounds = array<i64: 1, 128>}, {pipeline_mode = #tpu.pipeline_mode<synchronous>, transform_indices = @transform_5, window_bounds = array<i64: 128, 8>}, {pipeline_mode = #tpu.pipeline_mode<synchronous>, transform_indices = @transform_6, window_bounds = array<i64: 1, 8>}, {transform_indices = @transform_7, window_bounds = array<i64: 32, 8>}]} {
    %c0 = arith.constant 0 : index
    %c0_0 = arith.constant 0 : index
    %0 = vector.load %arg1[%c0, %c0_0] : memref<32x8xf32, #tpu.memory_space<vmem>>, vector<32x8xf32>
    %1 = arith.truncf %0 : vector<32x8xf32> to vector<32x8xbf16>
    %c0_1 = arith.constant 0 : index
    %c0_2 = arith.constant 0 : index
    %2 = vector.load %arg2[%c0_1, %c0_2] : memref<8x128xbf16, #tpu.memory_space<vmem>>, vector<8x128xbf16>
    %cst = arith.constant dense<0.000000e+00> : vector<32x128xf32>
    %3 = tpu.matmul %1, %2, %cst {dimension_numbers = #tpu.dot_dimension_numbers<[1], [0], [0], [1], [0, 0, 1, 1], [], []>} : vector<32x8xbf16>, vector<8x128xbf16>, vector<32x128xf32> -> vector<32x128xf32>
    %c0_3 = arith.constant 0 : index
    %c0_4 = arith.constant 0 : index
    %4 = vector.load %arg3[%c0_3, %c0_4] : memref<1x128xf32, #tpu.memory_space<vmem>>, vector<1x128xf32>
    %5 = vector.broadcast %4 : vector<1x128xf32> to vector<32x128xf32>
    %6 = arith.addf %3, %5 : vector<32x128xf32>
    %7 = math.tanh %6 : vector<32x128xf32>
    %8 = arith.truncf %7 : vector<32x128xf32> to vector<32x128xbf16>
    %c0_5 = arith.constant 0 : index
    %c0_6 = arith.constant 0 : index
    %9 = vector.load %arg4[%c0_5, %c0_6] : memref<128x128xbf16, #tpu.memory_space<vmem>>, vector<128x128xbf16>
    %cst_7 = arith.constant dense<0.000000e+00> : vector<32x128xf32>
    %10 = tpu.matmul %8, %9, %cst_7 {dimension_numbers = #tpu.dot_dimension_numbers<[1], [0], [0], [1], [0, 0, 1, 1], [], []>} : vector<32x128xbf16>, vector<128x128xbf16>, vector<32x128xf32> -> vector<32x128xf32>
    %c0_8 = arith.constant 0 : index
    %c0_9 = arith.constant 0 : index
    %11 = vector.load %arg5[%c0_8, %c0_9] : memref<1x128xf32, #tpu.memory_space<vmem>>, vector<1x128xf32>
    %12 = vector.broadcast %11 : vector<1x128xf32> to vector<32x128xf32>
    %13 = arith.addf %10, %12 : vector<32x128xf32>
    %14 = math.tanh %13 : vector<32x128xf32>
    %15 = arith.truncf %14 : vector<32x128xf32> to vector<32x128xbf16>
    %c0_10 = arith.constant 0 : index
    %c0_11 = arith.constant 0 : index
    %16 = vector.load %arg6[%c0_10, %c0_11] : memref<128x8xbf16, #tpu.memory_space<vmem>>, vector<128x8xbf16>
    %cst_12 = arith.constant dense<0.000000e+00> : vector<32x8xf32>
    %17 = tpu.matmul %15, %16, %cst_12 {dimension_numbers = #tpu.dot_dimension_numbers<[1], [0], [0], [1], [0, 0, 1, 1], [], []>} : vector<32x128xbf16>, vector<128x8xbf16>, vector<32x8xf32> -> vector<32x8xf32>
    %c0_13 = arith.constant 0 : index
    %c0_14 = arith.constant 0 : index
    %18 = vector.load %arg7[%c0_13, %c0_14] : memref<1x8xf32, #tpu.memory_space<vmem>>, vector<1x8xf32>
    %19 = vector.broadcast %18 : vector<1x8xf32> to vector<32x8xf32>
    %20 = arith.addf %17, %19 : vector<32x8xf32>
    %c0_15 = arith.constant 0 : index
    %c0_16 = arith.constant 0 : index
    %21 = vector.load %arg8[%c0_15, %c0_16] : memref<32x8xf32, #tpu.memory_space<vmem>>, vector<32x8xf32>
    tpu.vector_store %arg8[%c0_15, %c0_16], %20 {strides = array<i32>} : memref<32x8xf32, #tpu.memory_space<vmem>>, vector<32x8xf32>,
    return
  }
  func.func @transform_0(%arg0: i32) -> (i32, i32) {
    %c0_i32 = arith.constant 0 : i32
    %c0_i32_0 = arith.constant 0 : i32
    return %arg0, %c0_i32 : i32, i32
  }
  func.func @transform_1(%arg0: i32) -> (i32, i32) {
    %c0_i32 = arith.constant 0 : i32
    %c0_i32_0 = arith.constant 0 : i32
    %c0_i32_1 = arith.constant 0 : i32
    return %c0_i32, %c0_i32_0 : i32, i32
  }
  func.func @transform_2(%arg0: i32) -> (i32, i32) {
    %c0_i32 = arith.constant 0 : i32
    %c0_i32_0 = arith.constant 0 : i32
    %c0_i32_1 = arith.constant 0 : i32
    return %c0_i32, %c0_i32_0 : i32, i32
  }
  func.func @transform_3(%arg0: i32) -> (i32, i32) {
    %c0_i32 = arith.constant 0 : i32
    %c0_i32_0 = arith.constant 0 : i32
    %c0_i32_1 = arith.constant 0 : i32
    return %c0_i32, %c0_i32_0 : i32, i32
  }
  func.func @transform_4(%arg0: i32) -> (i32, i32) {
    %c0_i32 = arith.constant 0 : i32
    %c0_i32_0 = arith.constant 0 : i32
    %c0_i32_1 = arith.constant 0 : i32
    return %c0_i32, %c0_i32_0 : i32, i32
  }
  func.func @transform_5(%arg0: i32) -> (i32, i32) {
    %c0_i32 = arith.constant 0 : i32
    %c0_i32_0 = arith.constant 0 : i32
    %c0_i32_1 = arith.constant 0 : i32
    return %c0_i32, %c0_i32_0 : i32, i32
  }
  func.func @transform_6(%arg0: i32) -> (i32, i32) {
    %c0_i32 = arith.constant 0 : i32
    %c0_i32_0 = arith.constant 0 : i32
    %c0_i32_1 = arith.constant 0 : i32
    return %c0_i32, %c0_i32_0 : i32, i32
  }
  func.func @transform_7(%arg0: i32) -> (i32, i32) {
    %c0_i32 = arith.constant 0 : i32
    %c0_i32_0 = arith.constant 0 : i32
    return %arg0, %c0_i32 : i32, i32
  }
}

</mosaic_0001>

<llo_original>
// kernel: nn_forward.1
$region0: #{nn_forward.1}
  #allocation0 [shape = 'u32[]', space=smem, size = 0x4, offset = 0x4, fixed_abs, tag = 'smem constant byte address 0x4 - core index']
  #allocation1 [shape = 'u32[144,128]{1,0:T(1,128)}', space=vmem, size = 0x12000, scoped, tag = 'internal scratch']
  %s0 = inlined_call_operand.vmem [shape: f32[64,8], index: 0, kind: input, shape index: {}]
  %s1 = inlined_call_operand.vmem [shape: bf16[8,128], index: 1, kind: input, shape index: {}]
  %s2 = inlined_call_operand.vmem [shape: f32[1,128], index: 2, kind: input, shape index: {}]
  %s3 = inlined_call_operand.vmem [shape: bf16[128,128], index: 3, kind: input, shape index: {}]
  %s4 = inlined_call_operand.vmem [shape: f32[1,128], index: 4, kind: input, shape index: {}]
  %s5 = inlined_call_operand.vmem [shape: bf16[128,8], index: 5, kind: input, shape index: {}]
  %s6 = inlined_call_operand.vmem [shape: f32[1,8], index: 6, kind: input, shape index: {}]
  %s7 = inlined_call_operand.vmem [shape: f32[64,8], index: 7, kind: output, shape index: {}]
  %s8 = sld [smem:[#allocation0]]
  $region61: #{nn_forward.1} parent=0
    _
  %s10 = ssub.s32 1, %s8
  %s11 = scalar_select 0, %s10, %s8
  loop: start=0, step=1, limit=4
  $region2: #{nn_forward.1} parent=0 // loop_pre_header
    _
  $region3: #{nn_forward.1} parent=0 // loop_header
    %s13 = sphi 0, %s17
    %p14 = scmp.ge.s32.totalorder %s13, 4
    %s23 = sphi 0, %s25
    %s26 = sphi 0, %s23
    %s27 = sphi 0, %s26
    %s43 = sphi 0, %s27
    %s47 = sphi 0, %s47
    %s49 = sphi 0, %s47
    %s50 = sphi 0, %s49
    %s64 = sphi 0, %s50
    %s68 = sphi 0, %s68
    %s70 = sphi 0, %s68
    %s71 = sphi 0, %s70
    %s85 = sphi 0, %s71
    %s89 = sphi 0, %s89
    %s91 = sphi 0, %s89
    %s92 = sphi 0, %s91
    %s106 = sphi 0, %s92
    %s110 = sphi 0, %s110
    %s112 = sphi 0, %s110
    %s113 = sphi 0, %s112
    %s127 = sphi 0, %s113
    %s131 = sphi 0, %s131
    %s133 = sphi 0, %s131
    %s134 = sphi 0, %s133
    %s148 = sphi 0, %s134
    %s152 = sphi 0, %s152
    %s154 = sphi 0, %s152
    %s155 = sphi 0, %s154
    %s169 = sphi 0, %s155
    %s175 = sphi 0, %s177
    %s178 = sphi 0, %s175
    %s179 = sphi 0, %s178
    %s195 = sphi 0, %s179
  $region4: #{nn_forward.1} parent=0 // loop_header_branch
    %16 = sbr.rel (%p14) target = $region8
  $region5: #{nn_forward.1} parent=0 // loop_body
    %s18 = ssub.s32 %s13, 1
    %s19 = ssub.s32 %s13, 2
    %s20 = sadd.s32 %s13, 1
    %s21 = ssub.s32 %s13, %s20
    %p22 = scmp.eq.s32.totalorder %s21, 0
    %s24 = sadd.s32 %s23, 1
    %s25 = scalar_select %p22, %s23, %s24
    %p28 = pneg %p22
    %p29 = scmp.eq.s32.totalorder %s13, 1
    %p30 = por %p28, %p29
    %p31 = scmp.ne.s32.totalorder %s23, %s26
    %p32 = scmp.eq.s32.totalorder %s13, 0
    %p33 = por %p31, %p32
    %p34 = scmp.ne.s32.totalorder %s23, %s26
    %p35 = scmp.eq.s32.totalorder %s18, 1
    %p36 = por %p34, %p35
    %p37 = scmp.ne.s32.totalorder %s26, %s27
    %p38 = scmp.eq.s32.totalorder %s18, 0
    %p39 = por %p37, %p38
    %p40 = scmp.ne.s32.totalorder %s26, %s27
    %p41 = scmp.eq.s32.totalorder %s19, 1
    %p42 = por %p40, %p41
    %p44 = scmp.ne.s32.totalorder %s27, %s43
    %p45 = scmp.eq.s32.totalorder %s19, 0
    %p46 = por %p44, %p45
    %s48 = sadd.s32 %s47, 1
    %p51 = scmp.eq.s32.totalorder %s13, 1
    %p52 = scmp.ne.s32.totalorder %s47, %s49
    %p53 = scmp.eq.s32.totalorder %s13, 0
    %p54 = por %p52, %p53
    %p55 = scmp.ne.s32.totalorder %s47, %s49
    %p56 = scmp.eq.s32.totalorder %s18, 1
    %p57 = por %p55, %p56
    %p58 = scmp.ne.s32.totalorder %s49, %s50
    %p59 = scmp.eq.s32.totalorder %s18, 0
    %p60 = por %p58, %p59
    %p61 = scmp.ne.s32.totalorder %s49, %s50
    %p62 = scmp.eq.s32.totalorder %s19, 1
    %p63 = por %p61, %p62
    %p65 = scmp.ne.s32.totalorder %s50, %s64
    %p66 = scmp.eq.s32.totalorder %s19, 0
    %p67 = por %p65, %p66
    %s69 = sadd.s32 %s68, 1
    %p72 = scmp.eq.s32.totalorder %s13, 1
    %p73 = scmp.ne.s32.totalorder %s68, %s70
    %p74 = scmp.eq.s32.totalorder %s13, 0
    %p75 = por %p73, %p74
    %p76 = scmp.ne.s32.totalorder %s68, %s70
    %p77 = scmp.eq.s32.totalorder %s18, 1
    %p78 = por %p76, %p77
    %p79 = scmp.ne.s32.totalorder %s70, %s71
    %p80 = scmp.eq.s32.totalorder %s18, 0
    %p81 = por %p79, %p80
    %p82 = scmp.ne.s32.totalorder %s70, %s71
    %p83 = scmp.eq.s32.totalorder %s19, 1
    %p84 = por %p82, %p83
    %p86 = scmp.ne.s32.totalorder %s71, %s85
    %p87 = scmp.eq.s32.totalorder %s19, 0
    %p88 = por %p86, %p87
    %s90 = sadd.s32 %s89, 1
    %p93 = scmp.eq.s32.totalorder %s13, 1
    %p94 = scmp.ne.s32.totalorder %s89, %s91
    %p95 = scmp.eq.s32.totalorder %s13, 0
    %p96 = por %p94, %p95
    %p97 = scmp.ne.s32.totalorder %s89, %s91
    %p98 = scmp.eq.s32.totalorder %s18, 1
    %p99 = por %p97, %p98
    %p100 = scmp.ne.s32.totalorder %s91, %s92
    %p101 = scmp.eq.s32.totalorder %s18, 0
    %p102 = por %p100, %p101
    %p103 = scmp.ne.s32.totalorder %s91, %s92
    %p104 = scmp.eq.s32.totalorder %s19, 1
    %p105 = por %p103, %p104
    %p107 = scmp.ne.s32.totalorder %s92, %s106
    %p108 = scmp.eq.s32.totalorder %s19, 0
    %p109 = por %p107, %p108
    %s111 = sadd.s32 %s110, 1
    %p114 = scmp.eq.s32.totalorder %s13, 1
    %p115 = scmp.ne.s32.totalorder %s110, %s112
    %p116 = scmp.eq.s32.totalorder %s13, 0
    %p117 = por %p115, %p116
    %p118 = scmp.ne.s32.totalorder %s110, %s112
    %p119 = scmp.eq.s32.totalorder %s18, 1
    %p120 = por %p118, %p119
    %p121 = scmp.ne.s32.totalorder %s112, %s113
    %p122 = scmp.eq.s32.totalorder %s18, 0
    %p123 = por %p121, %p122
    %p124 = scmp.ne.s32.totalorder %s112, %s113
    %p125 = scmp.eq.s32.totalorder %s19, 1
    %p126 = por %p124, %p125
    %p128 = scmp.ne.s32.totalorder %s113, %s127
    %p129 = scmp.eq.s32.totalorder %s19, 0
    %p130 = por %p128, %p129
    %s132 = sadd.s32 %s131, 1
    %p135 = scmp.eq.s32.totalorder %s13, 1
    %p136 = scmp.ne.s32.totalorder %s131, %s133
    %p137 = scmp.eq.s32.totalorder %s13, 0
    %p138 = por %p136, %p137
    %p139 = scmp.ne.s32.totalorder %s131, %s133
    %p140 = scmp.eq.s32.totalorder %s18, 1
    %p141 = por %p139, %p140
    %p142 = scmp.ne.s32.totalorder %s133, %s134
    %p143 = scmp.eq.s32.totalorder %s18, 0
    %p144 = por %p142, %p143
    %p145 = scmp.ne.s32.totalorder %s133, %s134
    %p146 = scmp.eq.s32.totalorder %s19, 1
    %p147 = por %p145, %p146
    %p149 = scmp.ne.s32.totalorder %s134, %s148
    %p150 = scmp.eq.s32.totalorder %s19, 0
    %p151 = por %p149, %p150
    %s153 = sadd.s32 %s152, 1
    %p156 = scmp.eq.s32.totalorder %s13, 1
    %p157 = scmp.ne.s32.totalorder %s152, %s154
    %p158 = scmp.eq.s32.totalorder %s13, 0
    %p159 = por %p157, %p158
    %p160 = scmp.ne.s32.totalorder %s152, %s154
    %p161 = scmp.eq.s32.totalorder %s18, 1
    %p162 = por %p160, %p161
    %p163 = scmp.ne.s32.totalorder %s154, %s155
    %p164 = scmp.eq.s32.totalorder %s18, 0
    %p165 = por %p163, %p164
    %p166 = scmp.ne.s32.totalorder %s154, %s155
    %p167 = scmp.eq.s32.totalorder %s19, 1
    %p168 = por %p166, %p167
    %p170 = scmp.ne.s32.totalorder %s155, %s169
    %p171 = scmp.eq.s32.totalorder %s19, 0
    %p172 = por %p170, %p171
    %s173 = ssub.s32 %s13, %s20
    %p174 = scmp.eq.s32.totalorder %s173, 0
    %s176 = sadd.s32 %s175, 1
    %s177 = scalar_select %p174, %s175, %s176
    %p180 = pneg %p174
    %p181 = scmp.eq.s32.totalorder %s13, 1
    %p182 = por %p180, %p181
    %p183 = scmp.ne.s32.totalorder %s175, %s178
    %p184 = scmp.eq.s32.totalorder %s13, 0
    %p185 = por %p183, %p184
    %p186 = scmp.ne.s32.totalorder %s175, %s178
    %p187 = scmp.eq.s32.totalorder %s18, 1
    %p188 = por %p186, %p187
    %p189 = scmp.ne.s32.totalorder %s178, %s179
    %p190 = scmp.eq.s32.totalorder %s18, 0
    %p191 = por %p189, %p190
    %p192 = scmp.ne.s32.totalorder %s178, %s179
    %p193 = scmp.eq.s32.totalorder %s19, 1
    %p194 = por %p192, %p193
    %p196 = scmp.ne.s32.totalorder %s179, %s195
    %p197 = scmp.eq.s32.totalorder %s19, 0
    %p198 = por %p196, %p197
    %p199 = scmp.le.s32.totalorder 1, %s13
    %p200 = scmp.lt.s32.totalorder %s13, 3
    %p201 = pnand %p199, %p200
    %p202 = pneg %p201
    // Predicated region
    $region9: #{nn_forward.1} parent=5 // pred_check
      _
    $region10: #{nn_forward.1} parent=5 // pred_check_branch
      %204 = sbr.rel (%p201) target = $region12
    $region11: #{nn_forward.1} parent=5 // pred_region
      %s205 = ssub.s32 %s13, 1
      // Predicated region
      $region13: #{nn_forward.1} parent=11 // pred_check
        %p206 = pneg %p60
      $region14: #{nn_forward.1} parent=11 // pred_check_branch
        %208 = sbr.rel (%p206) target = $region16
      $region15: #{nn_forward.1} parent=11 // pred_region
        _
      $region16: #{nn_forward.1} parent=11 // pred_fallthru
        _
      // Predicated region
      $region17: #{nn_forward.1} parent=11 // pred_check
        %p209 = pneg %p81
      $region18: #{nn_forward.1} parent=11 // pred_check_branch
        %211 = sbr.rel (%p209) target = $region20
      $region19: #{nn_forward.1} parent=11 // pred_region
        _
      $region20: #{nn_forward.1} parent=11 // pred_fallthru
        _
      // Predicated region
      $region21: #{nn_forward.1} parent=11 // pred_check
        %p212 = pneg %p102
      $region22: #{nn_forward.1} parent=11 // pred_check_branch
        %214 = sbr.rel (%p212) target = $region24
      $region23: #{nn_forward.1} parent=11 // pred_region
        _
      $region24: #{nn_forward.1} parent=11 // pred_fallthru
        _
      // Predicated region
      $region25: #{nn_forward.1} parent=11 // pred_check
        %p215 = pneg %p123
      $region26: #{nn_forward.1} parent=11 // pred_check_branch
        %217 = sbr.rel (%p215) target = $region28
      $region27: #{nn_forward.1} parent=11 // pred_region
        _
      $region28: #{nn_forward.1} parent=11 // pred_fallthru
        _
      // Predicated region
      $region29: #{nn_forward.1} parent=11 // pred_check
        %p218 = pneg %p144
      $region30: #{nn_forward.1} parent=11 // pred_check_branch
        %220 = sbr.rel (%p218) target = $region32
      $region31: #{nn_forward.1} parent=11 // pred_region
        _
      $region32: #{nn_forward.1} parent=11 // pred_fallthru
        _
      // Predicated region
      $region33: #{nn_forward.1} parent=11 // pred_check
        %p221 = pneg %p165
      $region34: #{nn_forward.1} parent=11 // pred_check_branch
        %223 = sbr.rel (%p221) target = $region36
      $region35: #{nn_forward.1} parent=11 // pred_region
        _
      $region36: #{nn_forward.1} parent=11 // pred_fallthru
        _
    $region12: #{nn_forward.1} parent=5 // pred_fallthru
      _
    %p224 = scmp.lt.s32.totalorder %s13, 2
    // Predicated region
    $region37: #{nn_forward.1} parent=5 // pred_check
      %p225 = pneg %p224
    $region38: #{nn_forward.1} parent=5 // pred_check_branch
      %227 = sbr.rel (%p225) target = $region40
    $region39: #{nn_forward.1} parent=5 // pred_region
      // Predicated region
      $region41: #{nn_forward.1} parent=39 // pred_check
        %p228 = pneg %p33
      $region42: #{nn_forward.1} parent=39 // pred_check_branch
        %230 = sbr.rel (%p228) target = $region44
      $region43: #{nn_forward.1} parent=39 // pred_region
        %s231 = smul.u32 4, %s13
        %p232 = scmp.lt.s32.totalorder %s231, 7
        %s233 = scalar_select %p232, %s231, 7
        %s234 = smul.addr %s233, 8
        %s235 = scalar_lea.vmem %s0, %s234
        %s236 = smul.u32 4, %s13
      $region44: #{nn_forward.1} parent=39 // pred_fallthru
        _
    $region40: #{nn_forward.1} parent=5 // pred_fallthru
      _
    %p237 = scmp.le.s32.totalorder 1, %s13
    %p238 = scmp.lt.s32.totalorder %s13, 3
    %p239 = pnand %p237, %p238
    %p240 = pneg %p239
    // Predicated region
    $region45: #{nn_forward.1} parent=5 // pred_check
      _
    $region46: #{nn_forward.1} parent=5 // pred_check_branch
      %242 = sbr.rel (%p239) target = $region48
    $region47: #{nn_forward.1} parent=5 // pred_region
      %s243 = ssub.s32 %s13, 1
      %s244 = smul.u32 4, %s18
      %p245 = scmp.lt.s32.totalorder %s244, 7
      %s246 = scalar_select %p245, %s244, 7
      %s247 = smul.addr %s246, 8
      %s248 = scalar_lea.vmem %s0, %s247
      %p249 = pneg %p39
      %p250 = pneg %p36
      %p251 = pneg %p60
      %p252 = pneg %p57
      %p253 = pneg %p81
      %p254 = pneg %p78
      %p255 = pneg %p102
      %p256 = pneg %p99
      %p257 = pneg %p123
      %p258 = pneg %p120
      %p259 = pneg %p144
      %p260 = pneg %p141
      %p261 = pneg %p165
      %p262 = pneg %p162
      %p263 = pneg %p191
      %p264 = pneg %p188
      %s265 = smul.u32 4, %s18
      %p266 = scmp.lt.s32.totalorder %s265, 7
      %s267 = scalar_select %p266, %s265, 7
      %s268 = smul.addr %s267, 8
      %s269 = scalar_lea.vmem %s7, %s268
      %s270 = smul.u32 4, %s18
      %p271 = scmp.lt.s32.totalorder %s270, 7
      %s272 = scalar_select %p271, %s270, 7
      %s273 = smul.addr %s272, 8
      %s274 = scalar_lea.vmem %s0, %s273
      %s275 = smul.u32 4, %s18
      %s276 = smul.u32 4, %s18
      %p277 = scmp.lt.s32.totalorder %s276, 7
      %s278 = scalar_select %p277, %s276, 7
      %s279 = smul.addr %s278, 8
      %s280 = scalar_lea.vmem %s7, %s279
      %s281 = smul.u32 4, %s18
      %v283 = vld [vmem:[%s274] sm:$0xff]
      %v284 = vld [vmem:[%s274 + $0x8] sm:$0xff]
      %v285 = vld [vmem:[%s274 + $0x10] sm:$0xff]
      %v286 = vld [vmem:[%s274 + $0x18] sm:$0xff]
      %v287 = vpack.c.bf16 %v284, %v283
      %v288 = vpack.c.bf16 %v286, %v285
      %v289 = vld [vmem:[%s1] sm:$0xf]
      %v290 = vld [vmem:[%s2] sm:$0x1]
      %v292 = vlaneseq
      %v293 = vshrl.u32 %v292, 7
      %v294 = vsub.s32 0, %v293
      %v295 = vrot.slane %v290, %v294
      %vm297 = vcmask 64512
      %v299 = vsel %vm297, %v287, 0
      %v302 = vsel %vm297, %v288, 0
      %vm304 = vcmask 1043456
      %v306 = vsel %vm304, %v289, 0
      %308 = vmatprep.subr.bf16.mxu0 0
      %309 = vmatpush1.bf16.msra.mxu0 %v306
      %310 = vmatprep.subr.bf16.mxu0 0
      %311 = vmatpush1.bf16.msra.mxu0 0
      %312 = vmatprep.subr.bf16.mxu0 0
      %313 = vmatpush1.bf16.msra.mxu0 0
      %314 = vmatprep.subr.bf16.mxu0 0
      %315 = vmatpush1.bf16.msra.mxu0 0
      %316 = vmatprep.subr.bf16.mxu0 0
      %317 = vmatpush1.bf16.msra.mxu0 0
      %318 = vmatprep.subr.bf16.mxu0 0
      %319 = vmatpush1.bf16.msra.mxu0 0
      %320 = vmatprep.subr.bf16.mxu0 0
      %321 = vmatpush1.bf16.msra.mxu0 0
      %322 = vmatprep.subr.bf16.mxu0 0
      %323 = vmatpush1.bf16.msra.mxu0 0
      %324 = vmatprep.subr.bf16.mxu0 0
      %325 = vmatpush1.bf16.msra.mxu0 0
      %326 = vmatprep.subr.bf16.mxu0 0
      %327 = vmatpush1.bf16.msra.mxu0 0
      %328 = vmatprep.subr.bf16.mxu0 0
      %329 = vmatpush1.bf16.msra.mxu0 0
      %330 = vmatprep.subr.bf16.mxu0 0
      %331 = vmatpush1.bf16.msra.mxu0 0
      %332 = vmatprep.subr.bf16.mxu0 0
      %333 = vmatpush1.bf16.msra.mxu0 0
      %334 = vmatprep.subr.bf16.mxu0 0
      %335 = vmatpush1.bf16.msra.mxu0 0
      %336 = vmatprep.subr.bf16.mxu0 0
      %337 = vmatpush1.bf16.msra.mxu0 0
      %338 = vmatprep.subr.bf16.mxu0 0
      %339 = vmatpush1.bf16.msra.mxu0 0
      %340 = vmatprep.mubr.bf16.mxu0 0
      %341 = vmatmul.mubr.bf16.gmra.mrb[0].mxu0 %v299
      %v342 = vpop.f32.mrb[0].mxu0
      %v343 = vadd.f32 %v295, %v342
      %v344 = vpop.f32.mrb[0].mxu0
      %v345 = vpop.f32.mrb[0].mxu0
      %v346 = vadd.f32 %v295, %v345
      %v347 = vpop.f32.mrb[0].mxu0
      %348 = vmatprep.mubr.bf16.mxu0 0
      %349 = vmatmul.mubr.bf16.gmra.mrb[0].mxu0 %v302
      %v350 = vpop.f32.mrb[0].mxu0
      %v351 = vadd.f32 %v295, %v350
      %v352 = vpop.f32.mrb[0].mxu0
      %v353 = vpop.f32.mrb[0].mxu0
      %v354 = vadd.f32 %v295, %v353
      %v355 = vpop.f32.mrb[0].mxu0
      %356 = vdwg.mxu0
      %v357 = vtanh.pop %v343
      %v358 = vtanh.pop %v346
      %v359 = vtanh.pop %v351
      %v360 = vtanh.pop %v354
      %v361 = vpack.c.bf16 %v358, %v357
      %v362 = vpack.c.bf16 %v360, %v359
      %v363 = vld [vmem:[%s3] sm:$0xf]
      %v364 = vld [vmem:[%s3 + $0x4] sm:$0xf]
      %v365 = vld [vmem:[%s3 + $0x8] sm:$0xf]
      %v366 = vld [vmem:[%s3 + $0xc] sm:$0xf]
      %v367 = vld [vmem:[%s3 + $0x10] sm:$0xf]
      %v368 = vld [vmem:[%s3 + $0x14] sm:$0xf]
      %v369 = vld [vmem:[%s3 + $0x18] sm:$0xf]
      %v370 = vld [vmem:[%s3 + $0x1c] sm:$0xf]
      %v371 = vld [vmem:[%s3 + $0x20] sm:$0xf]
      %v372 = vld [vmem:[%s3 + $0x24] sm:$0xf]
      %v373 = vld [vmem:[%s3 + $0x28] sm:$0xf]
      %v374 = vld [vmem:[%s3 + $0x2c] sm:$0xf]
      %v375 = vld [vmem:[%s3 + $0x30] sm:$0xf]
      %v376 = vld [vmem:[%s3 + $0x34] sm:$0xf]
      %v377 = vld [vmem:[%s3 + $0x38] sm:$0xf]
      %v378 = vld [vmem:[%s3 + $0x3c] sm:$0xf]
      %v379 = vld [vmem:[%s4] sm:$0x1]
      %v381 = vlaneseq
      %v382 = vshrl.u32 %v381, 7
      %v383 = vsub.s32 0, %v382
      %v384 = vrot.slane %v379, %v383
      %v402 = vunpack.c.l.b16 %v363
      %v403 = vunpack.c.l.b16 %v364
      %v404 = vunpack.c.l.b16 %v365
      %v405 = vunpack.c.l.b16 %v366
      %v406 = vunpack.c.l.b16 %v367
      %v407 = vunpack.c.l.b16 %v368
      %v408 = vunpack.c.l.b16 %v369
      %v409 = vunpack.c.l.b16 %v370
      %v410 = vunpack.c.l.b16 %v371
      %v411 = vunpack.c.l.b16 %v372
      %v412 = vunpack.c.l.b16 %v373
      %v413 = vunpack.c.l.b16 %v374
      %v414 = vunpack.c.l.b16 %v375
      %v415 = vunpack.c.l.b16 %v376
      %v416 = vunpack.c.l.b16 %v377
      %v417 = vunpack.c.l.b16 %v378
      %v418 = vpack.c.b16 %v403, %v402
      %v419 = vpack.c.b16 %v405, %v404
      %v420 = vpack.c.b16 %v407, %v406
      %v421 = vpack.c.b16 %v409, %v408
      %v422 = vpack.c.b16 %v411, %v410
      %v423 = vpack.c.b16 %v413, %v412
      %v424 = vpack.c.b16 %v415, %v414
      %v425 = vpack.c.b16 %v417, %v416
      %434 = vmatprep.subr.bf16.mxu0 0
      %435 = vmatpush1.bf16.msra.mxu0 %v418
      %436 = vmatprep.subr.bf16.mxu0 0
      %437 = vmatpush1.bf16.msra.mxu0 %v419
      %438 = vmatprep.subr.bf16.mxu0 0
      %439 = vmatpush1.bf16.msra.mxu0 %v420
      %440 = vmatprep.subr.bf16.mxu0 0
      %441 = vmatpush1.bf16.msra.mxu0 %v421
      %442 = vmatprep.subr.bf16.mxu0 0
      %443 = vmatpush1.bf16.msra.mxu0 %v422
      %444 = vmatprep.subr.bf16.mxu0 0
      %445 = vmatpush1.bf16.msra.mxu0 %v423
      %446 = vmatprep.subr.bf16.mxu0 0
      %447 = vmatpush1.bf16.msra.mxu0 %v424
      %448 = vmatprep.subr.bf16.mxu0 0
      %449 = vmatpush1.bf16.msra.mxu0 %v425
      %450 = vmatprep.subr.bf16.mxu0 0
      %451 = vmatpush1.bf16.msra.mxu0 0
      %452 = vmatprep.subr.bf16.mxu0 0
      %453 = vmatpush1.bf16.msra.mxu0 0
      %454 = vmatprep.subr.bf16.mxu0 0
      %455 = vmatpush1.bf16.msra.mxu0 0
      %456 = vmatprep.subr.bf16.mxu0 0
      %457 = vmatpush1.bf16.msra.mxu0 0
      %458 = vmatprep.subr.bf16.mxu0 0
      %459 = vmatpush1.bf16.msra.mxu0 0
      %460 = vmatprep.subr.bf16.mxu0 0
      %461 = vmatpush1.bf16.msra.mxu0 0
      %462 = vmatprep.subr.bf16.mxu0 0
      %463 = vmatpush1.bf16.msra.mxu0 0
      %464 = vmatprep.subr.bf16.mxu0 0
      %465 = vmatpush1.bf16.msra.mxu0 0
      %466 = vmatprep.mubr.bf16.mxu0 0
      %467 = vmatmul.mubr.bf16.gmra.mrb[0].mxu0 %v361
      %v468 = vpop.f32.mrb[0].mxu0
      %v469 = vadd.f32 %v384, %v468
      %v470 = vpop.f32.mrb[0].mxu0
      %v471 = vpop.f32.mrb[0].mxu0
      %v472 = vadd.f32 %v384, %v471
      %v473 = vpop.f32.mrb[0].mxu0
      %474 = vmatprep.mubr.bf16.mxu0 0
      %475 = vmatmul.mubr.bf16.gmra.mrb[0].mxu0 %v362
      %v476 = vpop.f32.mrb[0].mxu0
      %v477 = vadd.f32 %v384, %v476
      %v478 = vpop.f32.mrb[0].mxu0
      %v479 = vpop.f32.mrb[0].mxu0
      %v480 = vadd.f32 %v384, %v479
      %v481 = vpop.f32.mrb[0].mxu0
      %482 = vdwg.mxu0
      %v483 = vtanh.pop %v469
      %v484 = vtanh.pop %v472
      %v485 = vtanh.pop %v477
      %v486 = vtanh.pop %v480
      %v487 = vpack.c.bf16 %v484, %v483
      %v488 = vpack.c.bf16 %v486, %v485
      %v489 = vld [vmem:[%s5] sm:$0xf]
      %v490 = vld [vmem:[%s5 + $0x4] sm:$0xf]
      %v491 = vld [vmem:[%s5 + $0x8] sm:$0xf]
      %v492 = vld [vmem:[%s5 + $0xc] sm:$0xf]
      %v493 = vld [vmem:[%s5 + $0x10] sm:$0xf]
      %v494 = vld [vmem:[%s5 + $0x14] sm:$0xf]
      %v495 = vld [vmem:[%s5 + $0x18] sm:$0xf]
      %v496 = vld [vmem:[%s5 + $0x1c] sm:$0xf]
      %v497 = vld [vmem:[%s5 + $0x20] sm:$0xf]
      %v498 = vld [vmem:[%s5 + $0x24] sm:$0xf]
      %v499 = vld [vmem:[%s5 + $0x28] sm:$0xf]
      %v500 = vld [vmem:[%s5 + $0x2c] sm:$0xf]
      %v501 = vld [vmem:[%s5 + $0x30] sm:$0xf]
      %v502 = vld [vmem:[%s5 + $0x34] sm:$0xf]
      %v503 = vld [vmem:[%s5 + $0x38] sm:$0xf]
      %v504 = vld [vmem:[%s5 + $0x3c] sm:$0xf]
      %v505 = vld [vmem:[%s6] sm:$0x1]
      %v507 = vlaneseq
      %v508 = vshrl.u32 %v507, 7
      %v509 = vsub.s32 0, %v508
      %v510 = vrot.slane %v505, %v509
      %v528 = vunpack.c.l.b16 %v489
      %v529 = vunpack.c.l.b16 %v490
      %v530 = vunpack.c.l.b16 %v491
      %v531 = vunpack.c.l.b16 %v492
      %v532 = vunpack.c.l.b16 %v493
      %v533 = vunpack.c.l.b16 %v494
      %v534 = vunpack.c.l.b16 %v495
      %v535 = vunpack.c.l.b16 %v496
      %v536 = vunpack.c.l.b16 %v497
      %v537 = vunpack.c.l.b16 %v498
      %v538 = vunpack.c.l.b16 %v499
      %v539 = vunpack.c.l.b16 %v500
      %v540 = vunpack.c.l.b16 %v501
      %v541 = vunpack.c.l.b16 %v502
      %v542 = vunpack.c.l.b16 %v503
      %v543 = vunpack.c.l.b16 %v504
      %v544 = vpack.c.b16 %v529, %v528
      %v545 = vpack.c.b16 %v531, %v530
      %v546 = vpack.c.b16 %v533, %v532
      %v547 = vpack.c.b16 %v535, %v534
      %v548 = vpack.c.b16 %v537, %v536
      %v549 = vpack.c.b16 %v539, %v538
      %v550 = vpack.c.b16 %v541, %v540
      %v551 = vpack.c.b16 %v543, %v542
      %560 = vmatprep.subr.bf16.mxu0 0
      %561 = vmatpush1.bf16.msra.mxu0 %v544
      %562 = vmatprep.subr.bf16.mxu0 0
      %563 = vmatpush1.bf16.msra.mxu0 %v545
      %564 = vmatprep.subr.bf16.mxu0 0
      %565 = vmatpush1.bf16.msra.mxu0 %v546
      %566 = vmatprep.subr.bf16.mxu0 0
      %567 = vmatpush1.bf16.msra.mxu0 %v547
      %568 = vmatprep.subr.bf16.mxu0 0
      %569 = vmatpush1.bf16.msra.mxu0 %v548
      %570 = vmatprep.subr.bf16.mxu0 0
      %571 = vmatpush1.bf16.msra.mxu0 %v549
      %572 = vmatprep.subr.bf16.mxu0 0
      %573 = vmatpush1.bf16.msra.mxu0 %v550
      %574 = vmatprep.subr.bf16.mxu0 0
      %575 = vmatpush1.bf16.msra.mxu0 %v551
      %576 = vmatprep.subr.bf16.mxu0 0
      %577 = vmatpush1.bf16.msra.mxu0 0
      %578 = vmatprep.subr.bf16.mxu0 0
      %579 = vmatpush1.bf16.msra.mxu0 0
      %580 = vmatprep.subr.bf16.mxu0 0
      %581 = vmatpush1.bf16.msra.mxu0 0
      %582 = vmatprep.subr.bf16.mxu0 0
      %583 = vmatpush1.bf16.msra.mxu0 0
      %584 = vmatprep.subr.bf16.mxu0 0
      %585 = vmatpush1.bf16.msra.mxu0 0
      %586 = vmatprep.subr.bf16.mxu0 0
      %587 = vmatpush1.bf16.msra.mxu0 0
      %588 = vmatprep.subr.bf16.mxu0 0
      %589 = vmatpush1.bf16.msra.mxu0 0
      %590 = vmatprep.subr.bf16.mxu0 0
      %591 = vmatpush1.bf16.msra.mxu0 0
      %592 = vmatprep.mubr.bf16.mxu0 0
      %593 = vmatmul.mubr.bf16.gmra.mrb[0].mxu0 %v487
      %v594 = vpop.f32.mrb[0].mxu0
      %v595 = vadd.f32 %v510, %v594
      %v596 = vpop.f32.mrb[0].mxu0
      %v597 = vpop.f32.mrb[0].mxu0
      %v598 = vadd.f32 %v510, %v597
      %v599 = vpop.f32.mrb[0].mxu0
      %600 = vmatprep.mubr.bf16.mxu0 0
      %601 = vmatmul.mubr.bf16.gmra.mrb[0].mxu0 %v488
      %v602 = vpop.f32.mrb[0].mxu0
      %v603 = vadd.f32 %v510, %v602
      %v604 = vpop.f32.mrb[0].mxu0
      %v605 = vpop.f32.mrb[0].mxu0
      %v606 = vadd.f32 %v510, %v605
      %v607 = vpop.f32.mrb[0].mxu0
      %608 = vdwg.mxu0
      %609 = vst.msk [vmem:[%s280] sm:$0xff] %vm297, %v595
      %610 = vst.msk [vmem:[%s280 + $0x8] sm:$0xff] %vm297, %v598
      %611 = vst.msk [vmem:[%s280 + $0x10] sm:$0xff] %vm297, %v603
      %612 = vst.msk [vmem:[%s280 + $0x18] sm:$0xff] %vm297, %v606
      %s613 = smul.u32 4, %s18
      %p614 = scmp.lt.s32.totalorder %s613, 7
      %s615 = scalar_select %p614, %s613, 7
      %s616 = smul.addr %s615, 8
      %s617 = scalar_lea.vmem %s7, %s616
      // Predicated region
      $region49: #{nn_forward.1} parent=47 // pred_check
        %p618 = pneg %p188
      $region50: #{nn_forward.1} parent=47 // pred_check_branch
        %620 = sbr.rel (%p618) target = $region52
      $region51: #{nn_forward.1} parent=47 // pred_region
        %s621 = smul.u32 4, %s18
      $region52: #{nn_forward.1} parent=47 // pred_fallthru
        _
    $region48: #{nn_forward.1} parent=5 // pred_fallthru
      _
    %p622 = scmp.le.s32.totalorder 2, %s13
    // Predicated region
    $region53: #{nn_forward.1} parent=5 // pred_check
      %p623 = pneg %p622
    $region54: #{nn_forward.1} parent=5 // pred_check_branch
      %625 = sbr.rel (%p623) target = $region56
    $region55: #{nn_forward.1} parent=5 // pred_region
      %s626 = ssub.s32 %s13, 2
      // Predicated region
      $region57: #{nn_forward.1} parent=55 // pred_check
        %p627 = pneg %p194
      $region58: #{nn_forward.1} parent=55 // pred_check_branch
        %629 = sbr.rel (%p627) target = $region60
      $region59: #{nn_forward.1} parent=55 // pred_region
        %s630 = smul.u32 4, %s19
        %p631 = scmp.lt.s32.totalorder %s630, 7
        %s632 = scalar_select %p631, %s630, 7
        %s633 = smul.addr %s632, 8
        %s634 = scalar_lea.vmem %s7, %s633
      $region60: #{nn_forward.1} parent=55 // pred_fallthru
        _
    $region56: #{nn_forward.1} parent=5 // pred_fallthru
      _
  $region6: #{nn_forward.1} parent=0 // loop_footer
    %s17 = sadd.s32 1, %s13
  $region7: #{nn_forward.1} parent=0 // loop_footer_branch
    %12 = sbr.rel target = $region3
  $region8: #{nn_forward.1} parent=0 // loop_exit
    _

</llo_original>
